<compile_context>
chip_gen: v5e
topology: v5e:2x2
jax: 0.10.0
libtpu: 0.0.40
codegen_flags: <defaults>
</compile_context>

<pallas_src>
import jax
import jax.numpy as jnp
from jax.experimental import pallas as pl
from jax.experimental.pallas import tpu as pltpu

_LANE_CHOICES = (512, 256, 128)         # lane-dense last dims (multiples of 128)
_TARGET_BLOCK_BYTES = 4 * 1024 * 1024   # ~4 MiB per in/out buffer
_SMALL_N_ELEMS = 64 * 1024              # below this a fused XLA op is strictly faster


def _round_up(a: int, m: int) -> int:
    return ((a + m - 1) // m) * m


def _linear_kernel(wb_ref, x_ref, o_ref):
    # wb_ref: (2,) f32 in SMEM holding [w, b]; x_ref/o_ref: (block_rows, L) VMEM tiles.
    w = wb_ref[0]
    b = wb_ref[1]
    y = x_ref[...].astype(jnp.float32) * w + b
    o_ref[...] = y.astype(o_ref.dtype)


def linear_forward(x, weight, bias, *, force_pallas: bool = False):
    """y = x @ weight.T + bias for weight (1, 1), bias (1,). x: (..., 1)."""
    out_dtype = jnp.result_type(x.dtype, weight.dtype, bias.dtype)
    w = weight.reshape(()).astype(jnp.float32)
    b = bias.reshape(()).astype(jnp.float32)

    n = x.size
    if not force_pallas and n <= _SMALL_N_ELEMS:
        # Tiny inputs: a single fused XLA elementwise op beats the pallas_call
        # fixed cost by orders of magnitude and is numerically identical.
        return (x.astype(jnp.float32) * w + b).astype(out_dtype)

    orig_shape = x.shape
    flat = x.reshape(-1)                       # metadata-only for contiguous x

    lanes = next((L for L in _LANE_CHOICES if n % L == 0), None)
    if lanes is None:
        # Non-128-multiple sizes: minimal pad (< 128 elements) + tail slice.
        # TODO(synk): this path costs one extra read+write of x and of y; the
        # divisible path (common power-of-two batches) is fully zero-copy.
        lanes = 128
        n_pad = _round_up(n, lanes)
        flat = jnp.pad(flat, (0, n_pad - n))
    else:
        n_pad = n

    rows = n_pad // lanes
    x2d = flat.reshape(rows, lanes)            # metadata-only

    itemsize = jnp.dtype(x.dtype).itemsize
    if rows * lanes * itemsize <= _TARGET_BLOCK_BYTES:
        block_rows = rows                      # single full-extent block
    else:
        block_rows = max(8, (_TARGET_BLOCK_BYTES // (lanes * itemsize)) // 8 * 8)
    grid = (pl.cdiv(rows, block_rows),)        # partial last block is masked

    wb = jnp.concatenate([w.reshape(1), b.reshape(1)])  # (2,) f32 scalar params

    y2d = pl.pallas_call(
        _linear_kernel,
        out_shape=jax.ShapeDtypeStruct((rows, lanes), out_dtype),
        grid=grid,
        in_specs=[
            pl.BlockSpec(memory_space=pltpu.SMEM),               # packed [w, b]
            pl.BlockSpec((block_rows, lanes), lambda i: (i, 0)),  # x row-tile
        ],
        out_specs=pl.BlockSpec((block_rows, lanes), lambda i: (i, 0)),
        compiler_params=pltpu.CompilerParams(
            # Independent row tiles: lets v7x shard the grid across its 2 TCs;
            # measured no-op on v5e/v6e.
            dimension_semantics=("parallel",),
            # 4 MiB x 2 arrays x 2 pipeline buffers = 16 MiB sits exactly at
            # v5e's default scoped limit; raise it so all generations keep
            # full double-buffering.
            vmem_limit_bytes=32 * 1024 * 1024,
        ),
    )(wb, x2d)

    y = y2d.reshape(-1)                        # metadata-only
    if n_pad != n:
        y = y[:n]
    return y.reshape(orig_shape)


if __name__ == "__main__":
    key = jax.random.PRNGKey(0)
    kx1, kx2, kx3, kw, kb = jax.random.split(key, 5)

    # Deterministic "trained" parameters, same shapes as nn.Linear(1, 1).
    weight = jax.random.uniform(kw, (1, 1), jnp.float32, minval=-1.0, maxval=1.0)
    bias = jax.random.uniform(kb, (1,), jnp.float32, minval=-1.0, maxval=1.0)

    # 1) Small batch consistent with the lesson (8 scalar samples): XLA fast path.
    x_small = jax.random.normal(kx1, (8, 1), jnp.float32)
    y_small = linear_forward(x_small, weight, bias)

    # 2) Lane-divisible batch forced through the Pallas kernel (zero-copy path).
    x_big = jax.random.normal(kx2, (4096, 1), jnp.float32)
    y_big = linear_forward(x_big, weight, bias, force_pallas=True)

    # 3) Non-128-multiple batch forced through the Pallas kernel (minimal-pad path).
    x_odd = jax.random.normal(kx3, (1000, 1), jnp.float32)
    y_odd = linear_forward(x_odd, weight, bias, force_pallas=True)

    jax.block_until_ready((y_small, y_big, y_odd))

    for xi, yi in ((x_small, y_small), (x_big, y_big), (x_odd, y_odd)):
        y_ref = xi @ weight.T + bias
        assert yi.shape == xi.shape
        assert jnp.allclose(yi, y_ref, atol=1e-6), "mismatch vs reference"

    print("KERNEL_OK")
</pallas_src>

<mosaic_0001>
module attributes {stable_mosaic.version = 11 : i64} {
  func.func @_linear_kernel(%arg0: i32, %arg1: memref<2xf32, #tpu.memory_space<smem>>, %arg2: memref<8x512xf32, #tpu.memory_space<vmem>>, %arg3: memref<8x512xf32, #tpu.memory_space<vmem>>) attributes {dimension_semantics = [#tpu.dimension_semantics<parallel>], iteration_bounds = array<i64: 1>, scalar_prefetch = 0 : i64, scratch_operands = 0 : i64, tpu.core_type = #tpu.core_type<tc>, window_params = [{transform_indices = @transform_0, window_bounds = array<i64: 2>}, {transform_indices = @transform_1, window_bounds = array<i64: 8, 512>}, {transform_indices = @transform_2, window_bounds = array<i64: 8, 512>}]} {
    %c0 = arith.constant 0 : index
    %0 = memref.load %arg1[%c0] : memref<2xf32, #tpu.memory_space<smem>>
    %c1 = arith.constant 1 : index
    %1 = memref.load %arg1[%c1] : memref<2xf32, #tpu.memory_space<smem>>
    %c0_0 = arith.constant 0 : index
    %c0_1 = arith.constant 0 : index
    %2 = vector.load %arg2[%c0_0, %c0_1] : memref<8x512xf32, #tpu.memory_space<vmem>>, vector<8x512xf32>
    %3 = vector.broadcast %0 : f32 to vector<8x512xf32>
    %4 = arith.mulf %2, %3 : vector<8x512xf32>
    %5 = vector.broadcast %1 : f32 to vector<8x512xf32>
    %6 = arith.addf %4, %5 : vector<8x512xf32>
    %c0_2 = arith.constant 0 : index
    %c0_3 = arith.constant 0 : index
    %7 = vector.load %arg3[%c0_2, %c0_3] : memref<8x512xf32, #tpu.memory_space<vmem>>, vector<8x512xf32>
    tpu.vector_store %arg3[%c0_2, %c0_3], %6 {strides = array<i32>} : memref<8x512xf32, #tpu.memory_space<vmem>>, vector<8x512xf32>,
    return
  }
  func.func @transform_0(%arg0: i32) -> i32 {
    %c0_i32 = arith.constant 0 : i32
    %c0_i32_0 = arith.constant 0 : i32
    return %c0_i32 : i32
  }
  func.func @transform_1(%arg0: i32) -> (i32, i32) {
    %c0_i32 = arith.constant 0 : i32
    %c0_i32_0 = arith.constant 0 : i32
    return %arg0, %c0_i32 : i32, i32
  }
  func.func @transform_2(%arg0: i32) -> (i32, i32) {
    %c0_i32 = arith.constant 0 : i32
    %c0_i32_0 = arith.constant 0 : i32
    return %arg0, %c0_i32 : i32, i32
  }
}

</mosaic_0001>

<llo_original>
// kernel: tpu_custom_call.1
$region0: #{tpu_custom_call.1}
  #allocation0 [shape = 'u32[]', space=smem, size = 0x4, offset = 0x4, fixed_abs, tag = 'smem constant byte address 0x4 - core index']
  #allocation1 [shape = 'u32[72,128]{1,0:T(1,128)}', space=vmem, size = 0x9000, scoped, tag = 'internal scratch']
  %s0 = inlined_call_operand.hbm [shape: f32[2], index: 0, kind: input, shape index: {}]
  %s1 = inlined_call_operand.hbm [shape: f32[8,512], index: 1, kind: input, shape index: {}]
  %s2 = inlined_call_operand.hbm [shape: f32[8,512], index: 2, kind: output, shape index: {}]
  %s3 = sld [smem:[#allocation0]]
  $region26: #{tpu_custom_call.1} parent=0
    _
  %s5 = ssub.s32 1, %s3
  %s6 = scalar_select 0, %s5, %s3
  $region1: #{tpu_custom_call.1} parent=0
    #allocation2 [shape = 'u8[512]{0}', space=smem, size = 0x200, scoped, tag = 'input window, operand 0, single buffered']
    #allocation3 [shape = 's32[1]{0}', space=sflag, size = 0x4, scoped, tag = 'scoped memory for tpu_custom_call.1']
    #allocation4 [shape = 's32[1]{0}', space=sflag, size = 0x4, scoped, tag = 'scoped memory for tpu_custom_call.1']
    #allocation5 [shape = 's32[1]{0}', space=sflag, size = 0x4, scoped, tag = 'scoped memory for tpu_custom_call.1']
    #allocation6 [shape = 'u8[16384]{0}', space=vmem, size = 0x4000, scoped, tag = 'input window, operand 1, single buffered']
    #allocation7 [shape = 'u8[16384]{0}', space=vmem, size = 0x4000, scoped, tag = 'output window, operand 0, single buffered']
    %7 = vsyncpa [#allocation5], 0
    %8 = vsyncpa [#allocation3], 0
    %9 = vsyncpa [#allocation4], 0
    // Predicated region
    $region2: #{tpu_custom_call.1} parent=1 // pred_check
      _
    $region3: #{tpu_custom_call.1} parent=1 // pred_check_branch
      %11 = sbr.rel (0) target = $region5
    $region4: #{tpu_custom_call.1} parent=1 // pred_region
      %13 = vsyncadd [#allocation5], 0
      %s15 = sshll.u32 %s0, 4
      %s16 = int_to_ptr.hbm [resolvable:$true] %s15
      %18 = dma.hbm_to_smem %s16, 16, [#allocation2], [#allocation5]
    $region5: #{tpu_custom_call.1} parent=1 // pred_fallthru
      _
    // Predicated region
    $region6: #{tpu_custom_call.1} parent=1 // pred_check
      _
    $region7: #{tpu_custom_call.1} parent=1 // pred_check_branch
      %20 = sbr.rel (0) target = $region9
    $region8: #{tpu_custom_call.1} parent=1 // pred_region
      %22 = vsyncadd [#allocation3], 0
      %s24 = sshll.u32 %s1, 4
      %s25 = int_to_ptr.hbm [resolvable:$true] %s24
      %s26 = sshll.u32 [#allocation6], 4
      %s27 = int_to_ptr.vmem [resolvable:$true] %s26
      %29 = dma.hbm_to_vmem [thread:$0]  %s25, 512, %s27, [#allocation3]
    $region9: #{tpu_custom_call.1} parent=1 // pred_fallthru
      _
    // Predicated region
    $region10: #{tpu_custom_call.1} parent=1 // pred_check
      _
    $region11: #{tpu_custom_call.1} parent=1 // pred_check_branch
      %31 = sbr.rel (0) target = $region13
    $region12: #{tpu_custom_call.1} parent=1 // pred_region
      %33 = dma.done [#allocation5], 16
    $region13: #{tpu_custom_call.1} parent=1 // pred_fallthru
      _
    // Predicated region
    $region14: #{tpu_custom_call.1} parent=1 // pred_check
      _
    $region15: #{tpu_custom_call.1} parent=1 // pred_check_branch
      %35 = sbr.rel (0) target = $region17
    $region16: #{tpu_custom_call.1} parent=1 // pred_region
      %37 = dma.done [#allocation3], 512
    $region17: #{tpu_custom_call.1} parent=1 // pred_fallthru
      _
    %38 = sfence
    %s39 = sld [smem:[#allocation2]]
    %s40 = sld [smem:[#allocation2 + $0x1]]
    %v41 = vld [vmem:[#allocation6] sm:$0xff]
    %v42 = vld [vmem:[#allocation6 + $0x8] sm:$0xff]
    %v43 = vld [vmem:[#allocation6 + $0x10] sm:$0xff]
    %v44 = vld [vmem:[#allocation6 + $0x18] sm:$0xff]
    %v45 = vstv %s39
    %v46 = vmul.f32 %v41, %v45
    %v47 = vmul.f32 %v42, %v45
    %v48 = vmul.f32 %v43, %v45
    %v49 = vmul.f32 %v44, %v45
    %v50 = vstv %s40
    %v51 = vadd.f32 %v46, %v50
    %v52 = vadd.f32 %v47, %v50
    %v53 = vadd.f32 %v48, %v50
    %v54 = vadd.f32 %v49, %v50
    %55 = vst [vmem:[#allocation7] sm:$0xff] %v51
    %56 = vst [vmem:[#allocation7 + $0x8] sm:$0xff] %v52
    %57 = vst [vmem:[#allocation7 + $0x10] sm:$0xff] %v53
    %58 = vst [vmem:[#allocation7 + $0x18] sm:$0xff] %v54
    // Predicated region
    $region18: #{tpu_custom_call.1} parent=1 // pred_check
      _
    $region19: #{tpu_custom_call.1} parent=1 // pred_check_branch
      %60 = sbr.rel (0) target = $region21
    $region20: #{tpu_custom_call.1} parent=1 // pred_region
      %62 = vsyncadd [#allocation4], 0
      %s64 = sshll.u32 [#allocation7], 4
      %s65 = int_to_ptr.vmem [resolvable:$true] %s64
      %s66 = sshll.u32 %s2, 4
      %s67 = int_to_ptr.hbm [resolvable:$true] %s66
      %69 = dma.vmem_to_hbm [thread:$0]  %s65, 512, %s67, [#allocation4]
    $region21: #{tpu_custom_call.1} parent=1 // pred_fallthru
      _
    // Predicated region
    $region22: #{tpu_custom_call.1} parent=1 // pred_check
      _
    $region23: #{tpu_custom_call.1} parent=1 // pred_check_branch
      %71 = sbr.rel (0) target = $region25
    $region24: #{tpu_custom_call.1} parent=1 // pred_region
      %73 = dma.done [#allocation4], 512
    $region25: #{tpu_custom_call.1} parent=1 // pred_fallthru
      _
    %74 = vsyncpa [#allocation3], 1
    %75 = vsyncpa [#allocation4], 1
    %76 = vsyncpa [#allocation5], 1

</llo_original>
